<compile_context>
chip_gen: v5e
topology: v5e:2x2
jax: 0.10.0
libtpu: 0.0.40
codegen_flags: <defaults>
</compile_context>

<pallas_src>
import math

import jax
import jax.numpy as jnp
from jax.experimental import pallas as pl
from jax.experimental.pallas import tpu as pltpu


# --------------------------------- kernel ------------------------------------

def bilstm_kernel(x_ref,                               # (B, S, I)
                  wih_f_ref, whh_f_ref, b_f_ref,       # (I,4H), (H,4H), (1,4H)
                  wih_b_ref, b_b_ref,                  # (I,4H), (1,4H)  (whh_b is dead: h0 = 0)
                  ln_g_ref, ln_b_ref,                  # (1,2H), (1,2H)
                  fc_w_ref, fc_b_ref,                  # (1,2H), (1,1)
                  o_ref):                              # (B, 1)
    B, S, I = x_ref.shape
    H = whh_f_ref.shape[0]

    xv = x_ref[...]                                    # (B, S, I)
    whh_f = whh_f_ref[...]

    # Hoisted, non-recurrent input projection: ONE lane-dense (B*S, I)x(I, 4H)
    # MXU call + one bias broadcast, instead of S small matmuls / bias adds on
    # the serial per-step dependency chain.
    gx = (jnp.dot(xv.reshape(B * S, I), wih_f_ref[...],
                  preferred_element_type=jnp.float32)
          + b_f_ref[...])                              # (B*S, 4H)
    gx = gx.reshape(B, S, 4 * H)                       # tile-aligned shape_cast

    def activate(gates):
        # 2 full-vreg EUP pushes (sigmoid + tanh) instead of 4 sub-vreg ones.
        sig = jax.nn.sigmoid(gates)
        th = jnp.tanh(gates)
        return (sig[:, 0 * H:1 * H],                   # i
                sig[:, 1 * H:2 * H],                   # f
                th[:, 2 * H:3 * H],                    # g
                sig[:, 3 * H:4 * H])                   # o

    # ---- forward direction: full recurrence, statically unrolled ------------
    # t = 0 peeled: h = c = 0, so h@whh_f, the f-gate and f*c are dead.
    i0, _, g0, o0 = activate(gx[:, 0, :])
    c = i0 * g0
    h = o0 * jnp.tanh(c)
    for t in range(1, S):
        gates = gx[:, t, :] + jnp.dot(h, whh_f,
                                      preferred_element_type=jnp.float32)
        i_g, f_g, g_g, o_g = activate(gates)
        c = f_g * c + i_g * g_g
        h = o_g * jnp.tanh(c)
    h_fwd_last = h

    # ---- backward direction --------------------------------------------------
    # Only out[:, -1, :] is read downstream; for the reverse direction the last
    # timestep is its FIRST step from a zero state, so h@whh_b, the f-gate and
    # f*c are all dead: just project x[:, -1, :].
    gb = (jnp.dot(xv[:, S - 1, :], wih_b_ref[...],
                  preferred_element_type=jnp.float32)
          + b_b_ref[...])                              # (B, 4H)
    i_b, _, g_b, o_b = activate(gb)
    c_b = i_b * g_b
    h_bwd_last = o_b * jnp.tanh(c_b)

    y = jnp.concatenate([h_fwd_last, h_bwd_last], axis=-1)      # (B, 2H)

    # LayerNorm over the feature dim (biased variance, eps inside rsqrt).
    mu = jnp.mean(y, axis=-1, keepdims=True)
    var = jnp.mean((y - mu) ** 2, axis=-1, keepdims=True)
    y = (y - mu) * jax.lax.rsqrt(var + 1e-5) * ln_g_ref[...] + ln_b_ref[...]

    # nn.Dropout at inference is identity.
    # TODO(synk): training-mode dropout is not implemented (inference semantics only).

    # fc: Linear(2H, 1) as VPU multiply + lane reduction, then sigmoid.
    logit = jnp.sum(y * fc_w_ref[...], axis=-1, keepdims=True) + fc_b_ref[...]
    o_ref[...] = jax.nn.sigmoid(logit)


# -------------------------------- wrapper -------------------------------------

def bilstm_forward(x, params):
    """x: (B, S, I) float32 -> (B, 1) float32.  Single fused pallas_call."""
    B, S, I = x.shape
    inputs = (x,
              params['wih_f'], params['whh_f'], params['b_f'],
              params['wih_b'], params['b_b'],          # whh_b intentionally NOT passed
              params['ln_g'], params['ln_b'],
              params['fc_w'], params['fc_b'])
    vmem = lambda: pl.BlockSpec(memory_space=pltpu.MemorySpace.VMEM)
    # TODO(synk): for non-toy B, add a batch grid axis with
    # dimension_semantics=("parallel",) to shard across v7x's 2 TensorCores,
    # and time-chunked BlockSpecs once S*B*I outgrows VMEM.
    return pl.pallas_call(
        bilstm_kernel,
        out_shape=jax.ShapeDtypeStruct((B, 1), jnp.float32),
        in_specs=[vmem() for _ in inputs],
        out_specs=vmem(),
    )(*inputs)


# ------------------------------ parameter init --------------------------------

def _xavier_uniform(key, shape):
    fan_out, fan_in = shape   # PyTorch Linear weight layout: (out_features, in_features)
    limit = math.sqrt(6.0 / (fan_in + fan_out))
    return jax.random.uniform(key, shape, jnp.float32, -limit, limit)


def init_params(key, input_size, hidden):
    """PyTorch defaults: LSTM weights ~ U(-1/sqrt(H), 1/sqrt(H));
    fc weight xavier_uniform, fc bias zeros (per the module's init loop)."""
    H = hidden
    k = 1.0 / math.sqrt(H)
    keys = jax.random.split(key, 9)
    u = lambda kk, shape: jax.random.uniform(kk, shape, jnp.float32, -k, k)
    return {
        # LSTM weights stored transposed (in, 4H) so gates = x @ W; order i,f,g,o.
        'wih_f': u(keys[0], (input_size, 4 * H)),
        'whh_f': u(keys[1], (H, 4 * H)),
        'b_f':   u(keys[2], (1, 4 * H)) + u(keys[3], (1, 4 * H)),   # b_ih + b_hh
        'wih_b': u(keys[4], (input_size, 4 * H)),
        'whh_b': u(keys[5], (H, 4 * H)),      # used only by the full reference
        'b_b':   u(keys[6], (1, 4 * H)) + u(keys[7], (1, 4 * H)),
        'ln_g':  jnp.ones((1, 2 * H), jnp.float32),
        'ln_b':  jnp.zeros((1, 2 * H), jnp.float32),
        'fc_w':  _xavier_uniform(keys[8], (1, 2 * H)),              # nn.Linear(2H, 1)
        'fc_b':  jnp.zeros((1, 1), jnp.float32),
    }


# --------------------------- pure-JAX reference --------------------------------

def _bilstm_reference(x, p):
    """Full (both-direction, all-timestep) reference for correctness checking."""
    B, S, _ = x.shape
    H = p['whh_f'].shape[0]

    def cell(x_t, h, c, wih, whh, b):
        g = x_t @ wih + h @ whh + b
        i = jax.nn.sigmoid(g[:, :H])
        f = jax.nn.sigmoid(g[:, H:2 * H])
        gg = jnp.tanh(g[:, 2 * H:3 * H])
        o = jax.nn.sigmoid(g[:, 3 * H:])
        c = f * c + i * gg
        h = o * jnp.tanh(c)
        return h, c

    def run(xseq, wih, whh, b):
        h = jnp.zeros((B, H), jnp.float32)
        c = jnp.zeros((B, H), jnp.float32)
        hs = []
        for t in range(S):
            h, c = cell(xseq[:, t, :], h, c, wih, whh, b)
            hs.append(h)
        return jnp.stack(hs, axis=1)                      # (B, S, H)

    h_f = run(x, p['wih_f'], p['whh_f'], p['b_f'])
    h_b = run(x[:, ::-1, :], p['wih_b'], p['whh_b'], p['b_b'])[:, ::-1, :]
    out = jnp.concatenate([h_f, h_b], axis=-1)            # (B, S, 2H)
    mu = jnp.mean(out, axis=-1, keepdims=True)
    var = jnp.mean((out - mu) ** 2, axis=-1, keepdims=True)
    out = (out - mu) / jnp.sqrt(var + 1e-5) * p['ln_g'] + p['ln_b']
    last = out[:, -1, :]                                   # (B, 2H)
    return jax.nn.sigmoid(last @ p['fc_w'].T + p['fc_b'])  # (B, 1)


# ---------------------------------- main ---------------------------------------

if __name__ == "__main__":
    # Small shapes consistent with the module: batch=2, seq=8, input=16, hidden=32.
    B, S, I, H = 2, 8, 16, 32

    key = jax.random.PRNGKey(0)
    pkey, xkey = jax.random.split(key)
    params = init_params(pkey, I, H)
    x = jax.random.normal(xkey, (B, S, I), jnp.float32)

    out = bilstm_forward(x, params)
    out = jax.block_until_ready(out)

    ref = _bilstm_reference(x, params)

    assert out.shape == (B, 1), out.shape
    assert bool(jnp.all(jnp.isfinite(out)))
    assert bool(jnp.all((out >= 0.0) & (out <= 1.0)))       # sigmoid output range
    assert bool(jnp.allclose(out, ref, atol=1e-4, rtol=1e-4)), (out, ref)
    print("KERNEL_OK")
</pallas_src>

<mosaic_0001>
module attributes {stable_mosaic.version = 11 : i64} {
  func.func @bilstm_kernel(%arg0: memref<2x8x16xf32, #tpu.memory_space<vmem>>, %arg1: memref<16x128xf32, #tpu.memory_space<vmem>>, %arg2: memref<32x128xf32, #tpu.memory_space<vmem>>, %arg3: memref<1x128xf32, #tpu.memory_space<vmem>>, %arg4: memref<16x128xf32, #tpu.memory_space<vmem>>, %arg5: memref<1x128xf32, #tpu.memory_space<vmem>>, %arg6: memref<1x64xf32, #tpu.memory_space<vmem>>, %arg7: memref<1x64xf32, #tpu.memory_space<vmem>>, %arg8: memref<1x64xf32, #tpu.memory_space<vmem>>, %arg9: memref<1x1xf32, #tpu.memory_space<vmem>>, %arg10: memref<2x1xf32, #tpu.memory_space<vmem>>) attributes {dimension_semantics = [], scalar_prefetch = 0 : i64, scratch_operands = 0 : i64, tpu.core_type = #tpu.core_type<tc>} {
    %c0 = arith.constant 0 : index
    %c0_0 = arith.constant 0 : index
    %c0_1 = arith.constant 0 : index
    %0 = vector.load %arg0[%c0, %c0_0, %c0_1] : memref<2x8x16xf32, #tpu.memory_space<vmem>>, vector<2x8x16xf32>
    %c0_2 = arith.constant 0 : index
    %c0_3 = arith.constant 0 : index
    %1 = vector.load %arg2[%c0_2, %c0_3] : memref<32x128xf32, #tpu.memory_space<vmem>>, vector<32x128xf32>
    %2 = vector.shape_cast %0 : vector<2x8x16xf32> to vector<16x16xf32>
    %c0_4 = arith.constant 0 : index
    %c0_5 = arith.constant 0 : index
    %3 = vector.load %arg1[%c0_4, %c0_5] : memref<16x128xf32, #tpu.memory_space<vmem>>, vector<16x128xf32>
    %cst = arith.constant dense<0.000000e+00> : vector<16x128xf32>
    %4 = tpu.matmul %2, %3, %cst {dimension_numbers = #tpu.dot_dimension_numbers<[1], [0], [0], [1], [0, 0, 1, 1], [], []>} : vector<16x16xf32>, vector<16x128xf32>, vector<16x128xf32> -> vector<16x128xf32>
    %c0_6 = arith.constant 0 : index
    %c0_7 = arith.constant 0 : index
    %5 = vector.load %arg3[%c0_6, %c0_7] : memref<1x128xf32, #tpu.memory_space<vmem>>, vector<1x128xf32>
    %6 = vector.broadcast %5 : vector<1x128xf32> to vector<16x128xf32>
    %7 = arith.addf %4, %6 : vector<16x128xf32>
    %8 = vector.shape_cast %7 : vector<16x128xf32> to vector<2x8x128xf32>
    %9 = vector.extract_strided_slice %8 {offsets = [0, 0, 0], sizes = [2, 1, 128], strides = [1, 1, 1]} : vector<2x8x128xf32> to vector<2x1x128xf32>
    %10 = vector.shape_cast %9 : vector<2x1x128xf32> to vector<2x128xf32>
    %11 = arith.negf %10 : vector<2x128xf32>
    %12 = math.exp %11 : vector<2x128xf32>
    %cst_8 = arith.constant 1.000000e+00 : f32
    %13 = vector.broadcast %cst_8 : f32 to vector<2x128xf32>
    %14 = arith.addf %13, %12 : vector<2x128xf32>
    %15 = arith.divf %13, %14 : vector<2x128xf32>
    %16 = math.tanh %10 : vector<2x128xf32>
    %17 = vector.extract_strided_slice %15 {offsets = [0, 0], sizes = [2, 32], strides = [1, 1]} : vector<2x128xf32> to vector<2x32xf32>
    %18 = vector.extract_strided_slice %16 {offsets = [0, 64], sizes = [2, 32], strides = [1, 1]} : vector<2x128xf32> to vector<2x32xf32>
    %19 = vector.extract_strided_slice %15 {offsets = [0, 96], sizes = [2, 32], strides = [1, 1]} : vector<2x128xf32> to vector<2x32xf32>
    %20 = arith.mulf %17, %18 : vector<2x32xf32>
    %21 = math.tanh %20 : vector<2x32xf32>
    %22 = arith.mulf %19, %21 : vector<2x32xf32>
    %23 = vector.extract_strided_slice %8 {offsets = [0, 1, 0], sizes = [2, 1, 128], strides = [1, 1, 1]} : vector<2x8x128xf32> to vector<2x1x128xf32>
    %24 = vector.shape_cast %23 : vector<2x1x128xf32> to vector<2x128xf32>
    %cst_9 = arith.constant dense<0.000000e+00> : vector<2x128xf32>
    %25 = tpu.matmul %22, %1, %cst_9 {dimension_numbers = #tpu.dot_dimension_numbers<[1], [0], [0], [1], [0, 0, 1, 1], [], []>} : vector<2x32xf32>, vector<32x128xf32>, vector<2x128xf32> -> vector<2x128xf32>
    %26 = arith.addf %24, %25 : vector<2x128xf32>
    %27 = arith.negf %26 : vector<2x128xf32>
    %28 = math.exp %27 : vector<2x128xf32>
    %cst_10 = arith.constant 1.000000e+00 : f32
    %29 = vector.broadcast %cst_10 : f32 to vector<2x128xf32>
    %30 = arith.addf %29, %28 : vector<2x128xf32>
    %31 = arith.divf %29, %30 : vector<2x128xf32>
    %32 = math.tanh %26 : vector<2x128xf32>
    %33 = vector.extract_strided_slice %31 {offsets = [0, 0], sizes = [2, 32], strides = [1, 1]} : vector<2x128xf32> to vector<2x32xf32>
    %34 = vector.extract_strided_slice %31 {offsets = [0, 32], sizes = [2, 32], strides = [1, 1]} : vector<2x128xf32> to vector<2x32xf32>
    %35 = vector.extract_strided_slice %32 {offsets = [0, 64], sizes = [2, 32], strides = [1, 1]} : vector<2x128xf32> to vector<2x32xf32>
    %36 = vector.extract_strided_slice %31 {offsets = [0, 96], sizes = [2, 32], strides = [1, 1]} : vector<2x128xf32> to vector<2x32xf32>
    %37 = arith.mulf %34, %20 : vector<2x32xf32>
    %38 = arith.mulf %33, %35 : vector<2x32xf32>
    %39 = arith.addf %37, %38 : vector<2x32xf32>
    %40 = math.tanh %39 : vector<2x32xf32>
    %41 = arith.mulf %36, %40 : vector<2x32xf32>
    %42 = vector.extract_strided_slice %8 {offsets = [0, 2, 0], sizes = [2, 1, 128], strides = [1, 1, 1]} : vector<2x8x128xf32> to vector<2x1x128xf32>
    %43 = vector.shape_cast %42 : vector<2x1x128xf32> to vector<2x128xf32>
    %cst_11 = arith.constant dense<0.000000e+00> : vector<2x128xf32>
    %44 = tpu.matmul %41, %1, %cst_11 {dimension_numbers = #tpu.dot_dimension_numbers<[1], [0], [0], [1], [0, 0, 1, 1], [], []>} : vector<2x32xf32>, vector<32x128xf32>, vector<2x128xf32> -> vector<2x128xf32>
    %45 = arith.addf %43, %44 : vector<2x128xf32>
    %46 = arith.negf %45 : vector<2x128xf32>
    %47 = math.exp %46 : vector<2x128xf32>
    %cst_12 = arith.constant 1.000000e+00 : f32
    %48 = vector.broadcast %cst_12 : f32 to vector<2x128xf32>
    %49 = arith.addf %48, %47 : vector<2x128xf32>
    %50 = arith.divf %48, %49 : vector<2x128xf32>
    %51 = math.tanh %45 : vector<2x128xf32>
    %52 = vector.extract_strided_slice %50 {offsets = [0, 0], sizes = [2, 32], strides = [1, 1]} : vector<2x128xf32> to vector<2x32xf32>
    %53 = vector.extract_strided_slice %50 {offsets = [0, 32], sizes = [2, 32], strides = [1, 1]} : vector<2x128xf32> to vector<2x32xf32>
    %54 = vector.extract_strided_slice %51 {offsets = [0, 64], sizes = [2, 32], strides = [1, 1]} : vector<2x128xf32> to vector<2x32xf32>
    %55 = vector.extract_strided_slice %50 {offsets = [0, 96], sizes = [2, 32], strides = [1, 1]} : vector<2x128xf32> to vector<2x32xf32>
    %56 = arith.mulf %53, %39 : vector<2x32xf32>
    %57 = arith.mulf %52, %54 : vector<2x32xf32>
    %58 = arith.addf %56, %57 : vector<2x32xf32>
    %59 = math.tanh %58 : vector<2x32xf32>
    %60 = arith.mulf %55, %59 : vector<2x32xf32>
    %61 = vector.extract_strided_slice %8 {offsets = [0, 3, 0], sizes = [2, 1, 128], strides = [1, 1, 1]} : vector<2x8x128xf32> to vector<2x1x128xf32>
    %62 = vector.shape_cast %61 : vector<2x1x128xf32> to vector<2x128xf32>
    %cst_13 = arith.constant dense<0.000000e+00> : vector<2x128xf32>
    %63 = tpu.matmul %60, %1, %cst_13 {dimension_numbers = #tpu.dot_dimension_numbers<[1], [0], [0], [1], [0, 0, 1, 1], [], []>} : vector<2x32xf32>, vector<32x128xf32>, vector<2x128xf32> -> vector<2x128xf32>
    %64 = arith.addf %62, %63 : vector<2x128xf32>
    %65 = arith.negf %64 : vector<2x128xf32>
    %66 = math.exp %65 : vector<2x128xf32>
    %cst_14 = arith.constant 1.000000e+00 : f32
    %67 = vector.broadcast %cst_14 : f32 to vector<2x128xf32>
    %68 = arith.addf %67, %66 : vector<2x128xf32>
    %69 = arith.divf %67, %68 : vector<2x128xf32>
    %70 = math.tanh %64 : vector<2x128xf32>
    %71 = vector.extract_strided_slice %69 {offsets = [0, 0], sizes = [2, 32], strides = [1, 1]} : vector<2x128xf32> to vector<2x32xf32>
    %72 = vector.extract_strided_slice %69 {offsets = [0, 32], sizes = [2, 32], strides = [1, 1]} : vector<2x128xf32> to vector<2x32xf32>
    %73 = vector.extract_strided_slice %70 {offsets = [0, 64], sizes = [2, 32], strides = [1, 1]} : vector<2x128xf32> to vector<2x32xf32>
    %74 = vector.extract_strided_slice %69 {offsets = [0, 96], sizes = [2, 32], strides = [1, 1]} : vector<2x128xf32> to vector<2x32xf32>
    %75 = arith.mulf %72, %58 : vector<2x32xf32>
    %76 = arith.mulf %71, %73 : vector<2x32xf32>
    %77 = arith.addf %75, %76 : vector<2x32xf32>
    %78 = math.tanh %77 : vector<2x32xf32>
    %79 = arith.mulf %74, %78 : vector<2x32xf32>
    %80 = vector.extract_strided_slice %8 {offsets = [0, 4, 0], sizes = [2, 1, 128], strides = [1, 1, 1]} : vector<2x8x128xf32> to vector<2x1x128xf32>
    %81 = vector.shape_cast %80 : vector<2x1x128xf32> to vector<2x128xf32>
    %cst_15 = arith.constant dense<0.000000e+00> : vector<2x128xf32>
    %82 = tpu.matmul %79, %1, %cst_15 {dimension_numbers = #tpu.dot_dimension_numbers<[1], [0], [0], [1], [0, 0, 1, 1], [], []>} : vector<2x32xf32>, vector<32x128xf32>, vector<2x128xf32> -> vector<2x128xf32>
    %83 = arith.addf %81, %82 : vector<2x128xf32>
    %84 = arith.negf %83 : vector<2x128xf32>
    %85 = math.exp %84 : vector<2x128xf32>
    %cst_16 = arith.constant 1.000000e+00 : f32
    %86 = vector.broadcast %cst_16 : f32 to vector<2x128xf32>
    %87 = arith.addf %86, %85 : vector<2x128xf32>
    %88 = arith.divf %86, %87 : vector<2x128xf32>
    %89 = math.tanh %83 : vector<2x128xf32>
    %90 = vector.extract_strided_slice %88 {offsets = [0, 0], sizes = [2, 32], strides = [1, 1]} : vector<2x128xf32> to vector<2x32xf32>
    %91 = vector.extract_strided_slice %88 {offsets = [0, 32], sizes = [2, 32], strides = [1, 1]} : vector<2x128xf32> to vector<2x32xf32>
    %92 = vector.extract_strided_slice %89 {offsets = [0, 64], sizes = [2, 32], strides = [1, 1]} : vector<2x128xf32> to vector<2x32xf32>
    %93 = vector.extract_strided_slice %88 {offsets = [0, 96], sizes = [2, 32], strides = [1, 1]} : vector<2x128xf32> to vector<2x32xf32>
    %94 = arith.mulf %91, %77 : vector<2x32xf32>
    %95 = arith.mulf %90, %92 : vector<2x32xf32>
    %96 = arith.addf %94, %95 : vector<2x32xf32>
    %97 = math.tanh %96 : vector<2x32xf32>
    %98 = arith.mulf %93, %97 : vector<2x32xf32>
    %99 = vector.extract_strided_slice %8 {offsets = [0, 5, 0], sizes = [2, 1, 128], strides = [1, 1, 1]} : vector<2x8x128xf32> to vector<2x1x128xf32>
    %100 = vector.shape_cast %99 : vector<2x1x128xf32> to vector<2x128xf32>
    %cst_17 = arith.constant dense<0.000000e+00> : vector<2x128xf32>
    %101 = tpu.matmul %98, %1, %cst_17 {dimension_numbers = #tpu.dot_dimension_numbers<[1], [0], [0], [1], [0, 0, 1, 1], [], []>} : vector<2x32xf32>, vector<32x128xf32>, vector<2x128xf32> -> vector<2x128xf32>
    %102 = arith.addf %100, %101 : vector<2x128xf32>
    %103 = arith.negf %102 : vector<2x128xf32>
    %104 = math.exp %103 : vector<2x128xf32>
    %cst_18 = arith.constant 1.000000e+00 : f32
    %105 = vector.broadcast %cst_18 : f32 to vector<2x128xf32>
    %106 = arith.addf %105, %104 : vector<2x128xf32>
    %107 = arith.divf %105, %106 : vector<2x128xf32>
    %108 = math.tanh %102 : vector<2x128xf32>
    %109 = vector.extract_strided_slice %107 {offsets = [0, 0], sizes = [2, 32], strides = [1, 1]} : vector<2x128xf32> to vector<2x32xf32>
    %110 = vector.extract_strided_slice %107 {offsets = [0, 32], sizes = [2, 32], strides = [1, 1]} : vector<2x128xf32> to vector<2x32xf32>
    %111 = vector.extract_strided_slice %108 {offsets = [0, 64], sizes = [2, 32], strides = [1, 1]} : vector<2x128xf32> to vector<2x32xf32>
    %112 = vector.extract_strided_slice %107 {offsets = [0, 96], sizes = [2, 32], strides = [1, 1]} : vector<2x128xf32> to vector<2x32xf32>
    %113 = arith.mulf %110, %96 : vector<2x32xf32>
    %114 = arith.mulf %109, %111 : vector<2x32xf32>
    %115 = arith.addf %113, %114 : vector<2x32xf32>
    %116 = math.tanh %115 : vector<2x32xf32>
    %117 = arith.mulf %112, %116 : vector<2x32xf32>
    %118 = vector.extract_strided_slice %8 {offsets = [0, 6, 0], sizes = [2, 1, 128], strides = [1, 1, 1]} : vector<2x8x128xf32> to vector<2x1x128xf32>
    %119 = vector.shape_cast %118 : vector<2x1x128xf32> to vector<2x128xf32>
    %cst_19 = arith.constant dense<0.000000e+00> : vector<2x128xf32>
    %120 = tpu.matmul %117, %1, %cst_19 {dimension_numbers = #tpu.dot_dimension_numbers<[1], [0], [0], [1], [0, 0, 1, 1], [], []>} : vector<2x32xf32>, vector<32x128xf32>, vector<2x128xf32> -> vector<2x128xf32>
    %121 = arith.addf %119, %120 : vector<2x128xf32>
    %122 = arith.negf %121 : vector<2x128xf32>
    %123 = math.exp %122 : vector<2x128xf32>
    %cst_20 = arith.constant 1.000000e+00 : f32
    %124 = vector.broadcast %cst_20 : f32 to vector<2x128xf32>
    %125 = arith.addf %124, %123 : vector<2x128xf32>
    %126 = arith.divf %124, %125 : vector<2x128xf32>
    %127 = math.tanh %121 : vector<2x128xf32>
    %128 = vector.extract_strided_slice %126 {offsets = [0, 0], sizes = [2, 32], strides = [1, 1]} : vector<2x128xf32> to vector<2x32xf32>
    %129 = vector.extract_strided_slice %126 {offsets = [0, 32], sizes = [2, 32], strides = [1, 1]} : vector<2x128xf32> to vector<2x32xf32>
    %130 = vector.extract_strided_slice %127 {offsets = [0, 64], sizes = [2, 32], strides = [1, 1]} : vector<2x128xf32> to vector<2x32xf32>
    %131 = vector.extract_strided_slice %126 {offsets = [0, 96], sizes = [2, 32], strides = [1, 1]} : vector<2x128xf32> to vector<2x32xf32>
    %132 = arith.mulf %129, %115 : vector<2x32xf32>
    %133 = arith.mulf %128, %130 : vector<2x32xf32>
    %134 = arith.addf %132, %133 : vector<2x32xf32>
    %135 = math.tanh %134 : vector<2x32xf32>
    %136 = arith.mulf %131, %135 : vector<2x32xf32>
    %137 = vector.extract_strided_slice %8 {offsets = [0, 7, 0], sizes = [2, 1, 128], strides = [1, 1, 1]} : vector<2x8x128xf32> to vector<2x1x128xf32>
    %138 = vector.shape_cast %137 : vector<2x1x128xf32> to vector<2x128xf32>
    %cst_21 = arith.constant dense<0.000000e+00> : vector<2x128xf32>
    %139 = tpu.matmul %136, %1, %cst_21 {dimension_numbers = #tpu.dot_dimension_numbers<[1], [0], [0], [1], [0, 0, 1, 1], [], []>} : vector<2x32xf32>, vector<32x128xf32>, vector<2x128xf32> -> vector<2x128xf32>
    %140 = arith.addf %138, %139 : vector<2x128xf32>
    %141 = arith.negf %140 : vector<2x128xf32>
    %142 = math.exp %141 : vector<2x128xf32>
    %cst_22 = arith.constant 1.000000e+00 : f32
    %143 = vector.broadcast %cst_22 : f32 to vector<2x128xf32>
    %144 = arith.addf %143, %142 : vector<2x128xf32>
    %145 = arith.divf %143, %144 : vector<2x128xf32>
    %146 = math.tanh %140 : vector<2x128xf32>
    %147 = vector.extract_strided_slice %145 {offsets = [0, 0], sizes = [2, 32], strides = [1, 1]} : vector<2x128xf32> to vector<2x32xf32>
    %148 = vector.extract_strided_slice %145 {offsets = [0, 32], sizes = [2, 32], strides = [1, 1]} : vector<2x128xf32> to vector<2x32xf32>
    %149 = vector.extract_strided_slice %146 {offsets = [0, 64], sizes = [2, 32], strides = [1, 1]} : vector<2x128xf32> to vector<2x32xf32>
    %150 = vector.extract_strided_slice %145 {offsets = [0, 96], sizes = [2, 32], strides = [1, 1]} : vector<2x128xf32> to vector<2x32xf32>
    %151 = arith.mulf %148, %134 : vector<2x32xf32>
    %152 = arith.mulf %147, %149 : vector<2x32xf32>
    %153 = arith.addf %151, %152 : vector<2x32xf32>
    %154 = math.tanh %153 : vector<2x32xf32>
    %155 = arith.mulf %150, %154 : vector<2x32xf32>
    %156 = vector.extract_strided_slice %0 {offsets = [0, 7, 0], sizes = [2, 1, 16], strides = [1, 1, 1]} : vector<2x8x16xf32> to vector<2x1x16xf32>
    %157 = vector.shape_cast %156 : vector<2x1x16xf32> to vector<2x16xf32>
    %c0_23 = arith.constant 0 : index
    %c0_24 = arith.constant 0 : index
    %158 = vector.load %arg4[%c0_23, %c0_24] : memref<16x128xf32, #tpu.memory_space<vmem>>, vector<16x128xf32>
    %cst_25 = arith.constant dense<0.000000e+00> : vector<2x128xf32>
    %159 = tpu.matmul %157, %158, %cst_25 {dimension_numbers = #tpu.dot_dimension_numbers<[1], [0], [0], [1], [0, 0, 1, 1], [], []>} : vector<2x16xf32>, vector<16x128xf32>, vector<2x128xf32> -> vector<2x128xf32>
    %c0_26 = arith.constant 0 : index
    %c0_27 = arith.constant 0 : index
    %160 = vector.load %arg5[%c0_26, %c0_27] : memref<1x128xf32, #tpu.memory_space<vmem>>, vector<1x128xf32>
    %161 = vector.broadcast %160 : vector<1x128xf32> to vector<2x128xf32>
    %162 = arith.addf %159, %161 : vector<2x128xf32>
    %163 = arith.negf %162 : vector<2x128xf32>
    %164 = math.exp %163 : vector<2x128xf32>
    %cst_28 = arith.constant 1.000000e+00 : f32
    %165 = vector.broadcast %cst_28 : f32 to vector<2x128xf32>
    %166 = arith.addf %165, %164 : vector<2x128xf32>
    %167 = arith.divf %165, %166 : vector<2x128xf32>
    %168 = math.tanh %162 : vector<2x128xf32>
    %169 = vector.extract_strided_slice %167 {offsets = [0, 0], sizes = [2, 32], strides = [1, 1]} : vector<2x128xf32> to vector<2x32xf32>
    %170 = vector.extract_strided_slice %168 {offsets = [0, 64], sizes = [2, 32], strides = [1, 1]} : vector<2x128xf32> to vector<2x32xf32>
    %171 = vector.extract_strided_slice %167 {offsets = [0, 96], sizes = [2, 32], strides = [1, 1]} : vector<2x128xf32> to vector<2x32xf32>
    %172 = arith.mulf %169, %170 : vector<2x32xf32>
    %173 = math.tanh %172 : vector<2x32xf32>
    %174 = arith.mulf %171, %173 : vector<2x32xf32>
    %175 = tpu.concatenate %155, %174 in 1 : vector<2x32xf32>, vector<2x32xf32> -> vector<2x64xf32>
    %cst_29 = arith.constant dense<0.000000e+00> : vector<2xf32>
    %176 = vector.multi_reduction <add>, %175, %cst_29 [1] : vector<2x64xf32> to vector<2xf32>
    %177 = vector.shape_cast %176 : vector<2xf32> to vector<2x1xf32>
    %cst_30 = arith.constant 6.400000e+01 : f32
    %178 = vector.broadcast %cst_30 : f32 to vector<2x1xf32>
    %179 = arith.divf %177, %178 : vector<2x1xf32>
    %180 = vector.broadcast %179 : vector<2x1xf32> to vector<2x64xf32>
    %181 = arith.subf %175, %180 : vector<2x64xf32>
    %182 = arith.mulf %181, %181 : vector<2x64xf32>
    %cst_31 = arith.constant dense<0.000000e+00> : vector<2xf32>
    %183 = vector.multi_reduction <add>, %182, %cst_31 [1] : vector<2x64xf32> to vector<2xf32>
    %184 = vector.shape_cast %183 : vector<2xf32> to vector<2x1xf32>
    %cst_32 = arith.constant 6.400000e+01 : f32
    %185 = vector.broadcast %cst_32 : f32 to vector<2x1xf32>
    %186 = arith.divf %184, %185 : vector<2x1xf32>
    %187 = vector.broadcast %179 : vector<2x1xf32> to vector<2x64xf32>
    %188 = arith.subf %175, %187 : vector<2x64xf32>
    %cst_33 = arith.constant 9.99999974E-6 : f32
    %189 = vector.broadcast %cst_33 : f32 to vector<2x1xf32>
    %190 = arith.addf %186, %189 : vector<2x1xf32>
    %191 = math.rsqrt %190 : vector<2x1xf32>
    %192 = vector.broadcast %191 : vector<2x1xf32> to vector<2x64xf32>
    %193 = arith.mulf %188, %192 : vector<2x64xf32>
    %c0_34 = arith.constant 0 : index
    %c0_35 = arith.constant 0 : index
    %194 = vector.load %arg6[%c0_34, %c0_35] : memref<1x64xf32, #tpu.memory_space<vmem>>, vector<1x64xf32>
    %195 = vector.broadcast %194 : vector<1x64xf32> to vector<2x64xf32>
    %196 = arith.mulf %193, %195 : vector<2x64xf32>
    %c0_36 = arith.constant 0 : index
    %c0_37 = arith.constant 0 : index
    %197 = vector.load %arg7[%c0_36, %c0_37] : memref<1x64xf32, #tpu.memory_space<vmem>>, vector<1x64xf32>
    %198 = vector.broadcast %197 : vector<1x64xf32> to vector<2x64xf32>
    %199 = arith.addf %196, %198 : vector<2x64xf32>
    %c0_38 = arith.constant 0 : index
    %c0_39 = arith.constant 0 : index
    %200 = vector.load %arg8[%c0_38, %c0_39] : memref<1x64xf32, #tpu.memory_space<vmem>>, vector<1x64xf32>
    %201 = vector.broadcast %200 : vector<1x64xf32> to vector<2x64xf32>
    %202 = arith.mulf %199, %201 : vector<2x64xf32>
    %cst_40 = arith.constant dense<0.000000e+00> : vector<2xf32>
    %203 = vector.multi_reduction <add>, %202, %cst_40 [1] : vector<2x64xf32> to vector<2xf32>
    %204 = vector.shape_cast %203 : vector<2xf32> to vector<2x1xf32>
    %c0_41 = arith.constant 0 : index
    %c0_42 = arith.constant 0 : index
    %205 = vector.load %arg9[%c0_41, %c0_42] : memref<1x1xf32, #tpu.memory_space<vmem>>, vector<1x1xf32>
    %206 = vector.broadcast %205 : vector<1x1xf32> to vector<2x1xf32>
    %207 = arith.addf %204, %206 : vector<2x1xf32>
    %208 = arith.negf %207 : vector<2x1xf32>
    %209 = math.exp %208 : vector<2x1xf32>
    %cst_43 = arith.constant 1.000000e+00 : f32
    %210 = vector.broadcast %cst_43 : f32 to vector<2x1xf32>
    %211 = arith.addf %210, %209 : vector<2x1xf32>
    %212 = arith.divf %210, %211 : vector<2x1xf32>
    %c0_44 = arith.constant 0 : index
    %c0_45 = arith.constant 0 : index
    %213 = vector.load %arg10[%c0_44, %c0_45] : memref<2x1xf32, #tpu.memory_space<vmem>>, vector<2x1xf32>
    tpu.vector_store %arg10[%c0_44, %c0_45], %212 {strides = array<i32>} : memref<2x1xf32, #tpu.memory_space<vmem>>, vector<2x1xf32>,
    return
  }
}

</mosaic_0001>

<llo_original>
// kernel: tpu_custom_call.1
$region0: #{tpu_custom_call.1}
  #allocation0 [shape = 'u32[]', space=smem, size = 0x4, offset = 0x4, fixed_abs, tag = 'smem constant byte address 0x4 - core index']
  #allocation1 [shape = 'u32[72,128]{1,0:T(1,128)}', space=vmem, size = 0x9000, scoped, tag = 'internal scratch']
  #allocation2 [shape = 'f32[1,1]{1,0:T(1,128)S(1)}', space=vmem, size = 0x200, scoped, tag = 'scoped memory for tpu_custom_call.1']
  %s0 = inlined_call_operand.hbm [shape: f32[2,8,16], index: 0, kind: input, shape index: {}]
  %s1 = inlined_call_operand.hbm [shape: f32[16,128], index: 1, kind: input, shape index: {}]
  %s2 = inlined_call_operand.hbm [shape: f32[32,128], index: 2, kind: input, shape index: {}]
  %s3 = inlined_call_operand.vmem [shape: f32[1,128], index: 3, kind: input, shape index: {}]
  %s4 = inlined_call_operand.hbm [shape: f32[16,128], index: 4, kind: input, shape index: {}]
  %s5 = inlined_call_operand.vmem [shape: f32[1,128], index: 5, kind: input, shape index: {}]
  %s6 = inlined_call_operand.vmem [shape: f32[1,64], index: 6, kind: input, shape index: {}]
  %s7 = inlined_call_operand.vmem [shape: f32[1,64], index: 7, kind: input, shape index: {}]
  %s8 = inlined_call_operand.vmem [shape: f32[1,64], index: 8, kind: input, shape index: {}]
  %s9 = inlined_call_operand.<no memory space> [shape: f32[1,1], index: 9, kind: input, shape index: {}]
  %s10 = inlined_call_operand.vmem [shape: f32[2,1], index: 10, kind: output, shape index: {}]
  %s11 = sld [smem:[#allocation0]]
  $region66: #{tpu_custom_call.1} parent=0
    _
  %s13 = ssub.s32 1, %s11
  %s14 = scalar_select 0, %s13, %s11
  %v15 = vstv %s9
  %16 = vst [vmem:[#allocation2] sm:$0x1] %v15
  $region1: #{tpu_custom_call.1} parent=0
    #allocation3 [shape = 'u8[8192]{0}', space=vmem, size = 0x2000, scoped, tag = 'input window, operand 0, single buffered']
    #allocation4 [shape = 's32[1]{0}', space=sflag, size = 0x4, scoped, tag = 'scoped memory for tpu_custom_call.1']
    #allocation5 [shape = 'u8[8192]{0}', space=vmem, size = 0x2000, scoped, tag = 'input window, operand 1, single buffered']
    #allocation6 [shape = 's32[1]{0}', space=sflag, size = 0x4, scoped, tag = 'scoped memory for tpu_custom_call.1']
    #allocation7 [shape = 'u8[16384]{0}', space=vmem, size = 0x4000, scoped, tag = 'input window, operand 2, single buffered']
    #allocation8 [shape = 'u8[8192]{0}', space=vmem, size = 0x2000, scoped, tag = 'input window, operand 4, single buffered']
    #allocation9 [shape = 's32[1]{0}', space=sflag, size = 0x4, scoped, tag = 'scoped memory for tpu_custom_call.1']
    %17 = vsyncpa [#allocation4], 0
    %18 = vsyncpa [#allocation6], 0
    %19 = vsyncpa [#allocation9], 0
    // Predicated region
    $region2: #{tpu_custom_call.1} parent=1 // pred_check
      _
    $region3: #{tpu_custom_call.1} parent=1 // pred_check_branch
      %21 = sbr.rel (0) target = $region5
    $region4: #{tpu_custom_call.1} parent=1 // pred_region
      %23 = vsyncadd [#allocation4], 0
      %s24 = sshll.u32 %s0, 4
      %s25 = int_to_ptr.hbm [resolvable:$true] %s24
      %s26 = sshll.u32 [#allocation3], 4
      %s27 = int_to_ptr.vmem [resolvable:$true] %s26
      %32 = dma.hbm_to_vmem [thread:$0]  %s25, 256, %s27, [#allocation4], 128, 128, 8
    $region5: #{tpu_custom_call.1} parent=1 // pred_fallthru
      _
    // Predicated region
    $region6: #{tpu_custom_call.1} parent=1 // pred_check
      _
    $region7: #{tpu_custom_call.1} parent=1 // pred_check_branch
      %34 = sbr.rel (0) target = $region9
    $region8: #{tpu_custom_call.1} parent=1 // pred_region
      %36 = vsyncadd [#allocation6], 0
      %s37 = sshll.u32 %s1, 4
      %s38 = int_to_ptr.hbm [resolvable:$true] %s37
      %s39 = sshll.u32 [#allocation5], 4
      %s40 = int_to_ptr.vmem [resolvable:$true] %s39
      %45 = dma.hbm_to_vmem [thread:$0]  %s38, 256, %s40, [#allocation6], 128, 128, 8
    $region9: #{tpu_custom_call.1} parent=1 // pred_fallthru
      _
    // Predicated region
    $region10: #{tpu_custom_call.1} parent=1 // pred_check
      _
    $region11: #{tpu_custom_call.1} parent=1 // pred_check_branch
      %47 = sbr.rel (0) target = $region13
    $region12: #{tpu_custom_call.1} parent=1 // pred_region
      %49 = vsyncadd [#allocation6], 0
      %s50 = sshll.u32 %s2, 4
      %s51 = int_to_ptr.hbm [resolvable:$true] %s50
      %s52 = sshll.u32 [#allocation7], 4
      %s53 = int_to_ptr.vmem [resolvable:$true] %s52
      %58 = dma.hbm_to_vmem [thread:$0]  %s51, 512, %s53, [#allocation6], 128, 128, 8
    $region13: #{tpu_custom_call.1} parent=1 // pred_fallthru
      _
    // Predicated region
    $region14: #{tpu_custom_call.1} parent=1 // pred_check
      _
    $region15: #{tpu_custom_call.1} parent=1 // pred_check_branch
      %60 = sbr.rel (0) target = $region17
    $region16: #{tpu_custom_call.1} parent=1 // pred_region
      _
    $region17: #{tpu_custom_call.1} parent=1 // pred_fallthru
      _
    // Predicated region
    $region18: #{tpu_custom_call.1} parent=1 // pred_check
      _
    $region19: #{tpu_custom_call.1} parent=1 // pred_check_branch
      %62 = sbr.rel (0) target = $region21
    $region20: #{tpu_custom_call.1} parent=1 // pred_region
      %64 = vsyncadd [#allocation9], 0
      %s65 = sshll.u32 %s4, 4
      %s66 = int_to_ptr.hbm [resolvable:$true] %s65
      %s67 = sshll.u32 [#allocation8], 4
      %s68 = int_to_ptr.vmem [resolvable:$true] %s67
      %73 = dma.hbm_to_vmem [thread:$0]  %s66, 256, %s68, [#allocation9], 128, 128, 8
    $region21: #{tpu_custom_call.1} parent=1 // pred_fallthru
      _
    // Predicated region
    $region22: #{tpu_custom_call.1} parent=1 // pred_check
      _
    $region23: #{tpu_custom_call.1} parent=1 // pred_check_branch
      %75 = sbr.rel (0) target = $region25
    $region24: #{tpu_custom_call.1} parent=1 // pred_region
      _
    $region25: #{tpu_custom_call.1} parent=1 // pred_fallthru
      _
    // Predicated region
    $region26: #{tpu_custom_call.1} parent=1 // pred_check
      _
    $region27: #{tpu_custom_call.1} parent=1 // pred_check_branch
      %77 = sbr.rel (0) target = $region29
    $region28: #{tpu_custom_call.1} parent=1 // pred_region
      _
    $region29: #{tpu_custom_call.1} parent=1 // pred_fallthru
      _
    // Predicated region
    $region30: #{tpu_custom_call.1} parent=1 // pred_check
      _
    $region31: #{tpu_custom_call.1} parent=1 // pred_check_branch
      %79 = sbr.rel (0) target = $region33
    $region32: #{tpu_custom_call.1} parent=1 // pred_region
      _
    $region33: #{tpu_custom_call.1} parent=1 // pred_fallthru
      _
    // Predicated region
    $region34: #{tpu_custom_call.1} parent=1 // pred_check
      _
    $region35: #{tpu_custom_call.1} parent=1 // pred_check_branch
      %81 = sbr.rel (0) target = $region37
    $region36: #{tpu_custom_call.1} parent=1 // pred_region
      _
    $region37: #{tpu_custom_call.1} parent=1 // pred_fallthru
      _
    // Predicated region
    $region38: #{tpu_custom_call.1} parent=1 // pred_check
      _
    $region39: #{tpu_custom_call.1} parent=1 // pred_check_branch
      %83 = sbr.rel (0) target = $region41
    $region40: #{tpu_custom_call.1} parent=1 // pred_region
      _
    $region41: #{tpu_custom_call.1} parent=1 // pred_fallthru
      _
    // Predicated region
    $region42: #{tpu_custom_call.1} parent=1 // pred_check
      _
    $region43: #{tpu_custom_call.1} parent=1 // pred_check_branch
      %85 = sbr.rel (0) target = $region45
    $region44: #{tpu_custom_call.1} parent=1 // pred_region
      %87 = dma.done [#allocation4], 256
    $region45: #{tpu_custom_call.1} parent=1 // pred_fallthru
      _
    // Predicated region
    $region46: #{tpu_custom_call.1} parent=1 // pred_check
      _
    $region47: #{tpu_custom_call.1} parent=1 // pred_check_branch
      %89 = sbr.rel (0) target = $region49
    $region48: #{tpu_custom_call.1} parent=1 // pred_region
      %91 = dma.done [#allocation6], 256
    $region49: #{tpu_custom_call.1} parent=1 // pred_fallthru
      _
    // Predicated region
    $region50: #{tpu_custom_call.1} parent=1 // pred_check
      _
    $region51: #{tpu_custom_call.1} parent=1 // pred_check_branch
      %93 = sbr.rel (0) target = $region53
    $region52: #{tpu_custom_call.1} parent=1 // pred_region
      %95 = dma.done [#allocation6], 512
    $region53: #{tpu_custom_call.1} parent=1 // pred_fallthru
      _
    // Predicated region
    $region54: #{tpu_custom_call.1} parent=1 // pred_check
      _
    $region55: #{tpu_custom_call.1} parent=1 // pred_check_branch
      %97 = sbr.rel (0) target = $region57
    $region56: #{tpu_custom_call.1} parent=1 // pred_region
      %99 = dma.done [#allocation9], 256
    $region57: #{tpu_custom_call.1} parent=1 // pred_fallthru
      _
    %v100 = vld [vmem:[#allocation3] sm:$0xff]
    %v101 = vld [vmem:[#allocation3 + $0x8] sm:$0xff]
    %v102 = vld [vmem:[#allocation7] sm:$0xff]
    %v103 = vld [vmem:[#allocation7 + $0x8] sm:$0xff]
    %v104 = vld [vmem:[#allocation7 + $0x10] sm:$0xff]
    %v105 = vld [vmem:[#allocation7 + $0x18] sm:$0xff]
    %v106 = vld [vmem:[#allocation5] sm:$0xff]
    %v107 = vld [vmem:[#allocation5 + $0x8] sm:$0xff]
    %v108 = vld [vmem:[%s3] sm:$0x1]
    %v110 = vperm.slane %v108, 0
    %vm112 = vcmask 130048
    %v114 = vsel %vm112, %v100, 0
    %v117 = vsel %vm112, %v101, 0
    %119 = vmatpush.msra.mxu0 0.0
    %120 = vmatpush.msra.mxu0 0.0
    %121 = vmatpush.msra.mxu0 0.0
    %122 = vmatpush.msra.mxu0 0.0
    %123 = vmatpush.msra.mxu0 0.0
    %124 = vmatpush.msra.mxu0 0.0
    %125 = vmatpush.msra.mxu0 0.0
    %126 = vmatpush.msra.mxu0 0.0
    %127 = vmatpush.msra.mxu0 0.0
    %128 = vmatpush.msra.mxu0 0.0
    %129 = vmatpush.msra.mxu0 0.0
    %130 = vmatpush.msra.mxu0 0.0
    %131 = vmatpush.msra.mxu0 0.0
    %132 = vmatpush.msra.mxu0 0.0
    %133 = vmatpush.msra.mxu0 %v107
    %134 = vmatpush.msra.mxu0 %v106
    %135 = vmatmul.f32.gmra.mxu0 %v114
    %v136 = vpop.f32.mrf.mxu0
    %v137 = vadd.f32 %v110, %v136
    %138 = vmatmul.f32.gmra.mxu0 %v117
    %v139 = vpop.f32.mrf.mxu0
    %v140 = vadd.f32 %v110, %v139
    %141 = vdwg.mxu0
    %v142 = vxor.u32 %v137, 2147483648
    %v143 = vxor.u32 %v140, 2147483648
    %v144 = vmul.f32 %v142, 1.442695
    %v145 = vpow.pop %v144
    %v146 = vmul.f32 %v143, 1.442695
    %v147 = vpow.pop %v146
    %v148 = vadd.f32 %v145, 1.0
    %v149 = vadd.f32 %v147, 1.0
    %v150 = vrcp.pop %v148
    %v151 = vmul.f32 %v148, %v150
    %v152 = vsub.f32 1.0, %v151
    %v153 = vmul.f32 %v150, %v152
    %v154 = vadd.f32 %v150, %v153
    %vm155 = vweird.f32 %v148
    %vm156 = vweird.f32 %v150
    %vm157 = vmor %vm155, %vm156
    %v158 = vsel %vm157, %v150, %v154
    %v159 = vand.u32 2147483647, %v148
    %vm160 = vcmp.eq.f32.partialorder %v159, 8.507059e+37
    %v161 = vand.u32 %v148, 2147483648
    %v162 = vor.u32 1.1754944e-38, %v161
    %v163 = vsel %vm160, %v162, %v158
    %v164 = vmul.f32 1.0, %v163
    %v165 = vrcp.pop %v149
    %v166 = vmul.f32 %v149, %v165
    %v167 = vsub.f32 1.0, %v166
    %v168 = vmul.f32 %v165, %v167
    %v169 = vadd.f32 %v165, %v168
    %vm170 = vweird.f32 %v149
    %vm171 = vweird.f32 %v165
    %vm172 = vmor %vm170, %vm171
    %v173 = vsel %vm172, %v165, %v169
    %v174 = vand.u32 2147483647, %v149
    %vm175 = vcmp.eq.f32.partialorder %v174, 8.507059e+37
    %v176 = vand.u32 %v149, 2147483648
    %v177 = vor.u32 1.1754944e-38, %v176
    %v178 = vsel %vm175, %v177, %v173
    %v179 = vmul.f32 1.0, %v178
    %v180 = vtanh.pop %v137
    %v181 = vtanh.pop %v140
    %184 = vrot.lane.b32.xlu0 %v180, 64
    %v185 = vpop.permute.xlu0 %184
    %186 = vrot.lane.b32.xlu0 %v181, 64
    %v187 = vpop.permute.xlu0 %186
    %v190 = vmul.f32 %v164, %v185
    %v191 = vmul.f32 %v179, %v187
    %v192 = vtanh.pop %v190
    %v193 = vtanh.pop %v191
    %196 = vrot.lane.b32.xlu0 %v192, 96
    %v197 = vpop.permute.xlu0 %196
    %198 = vrot.lane.b32.xlu0 %v193, 96
    %v199 = vpop.permute.xlu0 %198
    %v202 = vmul.f32 %v164, %v197
    %v203 = vmul.f32 %v179, %v199
    %v206 = vrot.slane %v203, 7
    %vm207 = vcmask 1041409
    %v208 = vsel %vm207, %v206, %v202
    %209 = vrot.lane.b32.xlu0 %v208, 32
    %v210 = vpop.permute.xlu0 %209
    %vm211 = vcmask 261120
    %v212 = vsel %vm211, %v210, 0
    %214 = vmatpush.msra.mxu0 0.0
    %215 = vmatpush.msra.mxu0 0.0
    %216 = vmatpush.msra.mxu0 0.0
    %217 = vmatpush.msra.mxu0 0.0
    %218 = vmatpush.msra.mxu0 0.0
    %219 = vmatpush.msra.mxu0 0.0
    %220 = vmatpush.msra.mxu0 0.0
    %221 = vmatpush.msra.mxu0 0.0
    %222 = vmatpush.msra.mxu0 0.0
    %223 = vmatpush.msra.mxu0 0.0
    %224 = vmatpush.msra.mxu0 0.0
    %225 = vmatpush.msra.mxu0 0.0
    %226 = vmatpush.msra.mxu0 %v105
    %227 = vmatpush.msra.mxu0 %v104
    %228 = vmatpush.msra.mxu0 %v103
    %229 = vmatpush.msra.mxu0 %v102
    %230 = vmatmul.f32.gmra.mxu0 %v212
    %v231 = vpop.f32.mrf.mxu0
    %v232 = vadd.f32 0.0, %v231
    %233 = vdwg.mxu0
    %v235 = vrot.slane %v232, 7
    %v238 = vadd.f32 %v137, %v235
    %v239 = vadd.f32 %v140, %v232
    %v240 = vxor.u32 %v238, 2147483648
    %v241 = vxor.u32 %v239, 2147483648
    %v242 = vmul.f32 %v240, 1.442695
    %v243 = vpow.pop %v242
    %v244 = vmul.f32 %v241, 1.442695
    %v245 = vpow.pop %v244
    %v246 = vadd.f32 %v243, 1.0
    %v247 = vadd.f32 %v245, 1.0
    %v248 = vrcp.pop %v246
    %v249 = vmul.f32 %v246, %v248
    %v250 = vsub.f32 1.0, %v249
    %v251 = vmul.f32 %v248, %v250
    %v252 = vadd.f32 %v248, %v251
    %vm253 = vweird.f32 %v246
    %vm254 = vweird.f32 %v248
    %vm255 = vmor %vm253, %vm254
    %v256 = vsel %vm255, %v248, %v252
    %v257 = vand.u32 2147483647, %v246
    %vm258 = vcmp.eq.f32.partialorder %v257, 8.507059e+37
    %v259 = vand.u32 %v246, 2147483648
    %v260 = vor.u32 1.1754944e-38, %v259
    %v261 = vsel %vm258, %v260, %v256
    %v262 = vmul.f32 1.0, %v261
    %v263 = vrcp.pop %v247
    %v264 = vmul.f32 %v247, %v263
    %v265 = vsub.f32 1.0, %v264
    %v266 = vmul.f32 %v263, %v265
    %v267 = vadd.f32 %v263, %v266
    %vm268 = vweird.f32 %v247
    %vm269 = vweird.f32 %v263
    %vm270 = vmor %vm268, %vm269
    %v271 = vsel %vm270, %v263, %v267
    %v272 = vand.u32 2147483647, %v247
    %vm273 = vcmp.eq.f32.partialorder %v272, 8.507059e+37
    %v274 = vand.u32 %v247, 2147483648
    %v275 = vor.u32 1.1754944e-38, %v274
    %v276 = vsel %vm273, %v275, %v271
    %v277 = vmul.f32 1.0, %v276
    %v278 = vtanh.pop %v238
    %v279 = vtanh.pop %v239
    %v282 = vrot.slane %v190, 7
    %v283 = vrot.slane %v191, 7
    %284 = vrot.lane.b32.xlu0 %v282, 32
    %v285 = vpop.permute.xlu0 %284
    %286 = vrot.lane.b32.xlu0 %v283, 32
    %v287 = vpop.permute.xlu0 %286
    %v290 = vmul.f32 %v262, %v285
    %v291 = vmul.f32 %v277, %v287
    %294 = vrot.lane.b32.xlu0 %v278, 64
    %v295 = vpop.permute.xlu0 %294
    %296 = vrot.lane.b32.xlu0 %v279, 64
    %v297 = vpop.permute.xlu0 %296
    %v300 = vmul.f32 %v262, %v295
    %v301 = vmul.f32 %v277, %v297
    %304 = vrot.lane.b32.xlu0 %v300, 32
    %v305 = vpop.permute.xlu0 %304
    %306 = vrot.lane.b32.xlu0 %v301, 32
    %v307 = vpop.permute.xlu0 %306
    %v310 = vadd.f32 %v290, %v305
    %v311 = vadd.f32 %v291, %v307
    %v312 = vtanh.pop %v310
    %v313 = vtanh.pop %v311
    %316 = vrot.lane.b32.xlu0 %v312, 64
    %v317 = vpop.permute.xlu0 %316
    %318 = vrot.lane.b32.xlu0 %v313, 64
    %v319 = vpop.permute.xlu0 %318
    %v322 = vmul.f32 %v262, %v317
    %v323 = vmul.f32 %v277, %v319
    %v326 = vrot.slane %v322, 1
    %v327 = vsel %vm207, %v323, %v326
    %328 = vrot.lane.b32.xlu0 %v327, 32
    %v329 = vpop.permute.xlu0 %328
    %v330 = vsel %vm211, %v329, 0
    %332 = vmatpush.msra.mxu0 0.0
    %333 = vmatpush.msra.mxu0 0.0
    %334 = vmatpush.msra.mxu0 0.0
    %335 = vmatpush.msra.mxu0 0.0
    %336 = vmatpush.msra.mxu0 0.0
    %337 = vmatpush.msra.mxu0 0.0
    %338 = vmatpush.msra.mxu0 0.0
    %339 = vmatpush.msra.mxu0 0.0
    %340 = vmatpush.msra.mxu0 0.0
    %341 = vmatpush.msra.mxu0 0.0
    %342 = vmatpush.msra.mxu0 0.0
    %343 = vmatpush.msra.mxu0 0.0
    %344 = vmatpush.msra.mxu0 %v105
    %345 = vmatpush.msra.mxu0 %v104
    %346 = vmatpush.msra.mxu0 %v103
    %347 = vmatpush.msra.mxu0 %v102
    %348 = vmatmul.f32.gmra.mxu0 %v330
    %v349 = vpop.f32.mrf.mxu0
    %v350 = vadd.f32 0.0, %v349
    %351 = vdwg.mxu0
    %v353 = vrot.slane %v350, 6
    %v354 = vrot.slane %v350, 7
    %v357 = vadd.f32 %v137, %v353
    %v358 = vadd.f32 %v140, %v354
    %v359 = vxor.u32 %v357, 2147483648
    %v360 = vxor.u32 %v358, 2147483648
    %v361 = vmul.f32 %v359, 1.442695
    %v362 = vpow.pop %v361
    %v363 = vmul.f32 %v360, 1.442695
    %v364 = vpow.pop %v363
    %v365 = vadd.f32 %v362, 1.0
    %v366 = vadd.f32 %v364, 1.0
    %v367 = vrcp.pop %v365
    %v368 = vmul.f32 %v365, %v367
    %v369 = vsub.f32 1.0, %v368
    %v370 = vmul.f32 %v367, %v369
    %v371 = vadd.f32 %v367, %v370
    %vm372 = vweird.f32 %v365
    %vm373 = vweird.f32 %v367
    %vm374 = vmor %vm372, %vm373
    %v375 = vsel %vm374, %v367, %v371
    %v376 = vand.u32 2147483647, %v365
    %vm377 = vcmp.eq.f32.partialorder %v376, 8.507059e+37
    %v378 = vand.u32 %v365, 2147483648
    %v379 = vor.u32 1.1754944e-38, %v378
    %v380 = vsel %vm377, %v379, %v375
    %v381 = vmul.f32 1.0, %v380
    %v382 = vrcp.pop %v366
    %v383 = vmul.f32 %v366, %v382
    %v384 = vsub.f32 1.0, %v383
    %v385 = vmul.f32 %v382, %v384
    %v386 = vadd.f32 %v382, %v385
    %vm387 = vweird.f32 %v366
    %vm388 = vweird.f32 %v382
    %vm389 = vmor %vm387, %vm388
    %v390 = vsel %vm389, %v382, %v386
    %v391 = vand.u32 2147483647, %v366
    %vm392 = vcmp.eq.f32.partialorder %v391, 8.507059e+37
    %v393 = vand.u32 %v366, 2147483648
    %v394 = vor.u32 1.1754944e-38, %v393
    %v395 = vsel %vm392, %v394, %v390
    %v396 = vmul.f32 1.0, %v395
    %v397 = vtanh.pop %v357
    %v398 = vtanh.pop %v358
    %v401 = vrot.slane %v310, 7
    %v402 = vrot.slane %v311, 7
    %v405 = vmul.f32 %v381, %v401
    %v406 = vmul.f32 %v396, %v402
    %409 = vrot.lane.b32.xlu0 %v397, 64
    %v410 = vpop.permute.xlu0 %409
    %411 = vrot.lane.b32.xlu0 %v398, 64
    %v412 = vpop.permute.xlu0 %411
    %v415 = vmul.f32 %v381, %v410
    %v416 = vmul.f32 %v396, %v412
    %419 = vrot.lane.b32.xlu0 %v415, 32
    %v420 = vpop.permute.xlu0 %419
    %421 = vrot.lane.b32.xlu0 %v416, 32
    %v422 = vpop.permute.xlu0 %421
    %v425 = vadd.f32 %v405, %v420
    %v426 = vadd.f32 %v406, %v422
    %v427 = vtanh.pop %v425
    %v428 = vtanh.pop %v426
    %431 = vrot.lane.b32.xlu0 %v427, 64
    %v432 = vpop.permute.xlu0 %431
    %433 = vrot.lane.b32.xlu0 %v428, 64
    %v434 = vpop.permute.xlu0 %433
    %v437 = vmul.f32 %v381, %v432
    %v438 = vmul.f32 %v396, %v434
    %v441 = vrot.slane %v437, 2
    %v442 = vrot.slane %v438, 1
    %v443 = vsel %vm207, %v442, %v441
    %444 = vrot.lane.b32.xlu0 %v443, 32
    %v445 = vpop.permute.xlu0 %444
    %v446 = vsel %vm211, %v445, 0
    %448 = vmatpush.msra.mxu0 0.0
    %449 = vmatpush.msra.mxu0 0.0
    %450 = vmatpush.msra.mxu0 0.0
    %451 = vmatpush.msra.mxu0 0.0
    %452 = vmatpush.msra.mxu0 0.0
    %453 = vmatpush.msra.mxu0 0.0
    %454 = vmatpush.msra.mxu0 0.0
    %455 = vmatpush.msra.mxu0 0.0
    %456 = vmatpush.msra.mxu0 0.0
    %457 = vmatpush.msra.mxu0 0.0
    %458 = vmatpush.msra.mxu0 0.0
    %459 = vmatpush.msra.mxu0 0.0
    %460 = vmatpush.msra.mxu0 %v105
    %461 = vmatpush.msra.mxu0 %v104
    %462 = vmatpush.msra.mxu0 %v103
    %463 = vmatpush.msra.mxu0 %v102
    %464 = vmatmul.f32.gmra.mxu0 %v446
    %v465 = vpop.f32.mrf.mxu0
    %v466 = vadd.f32 0.0, %v465
    %467 = vdwg.mxu0
    %v469 = vrot.slane %v466, 5
    %v470 = vrot.slane %v466, 6
    %v473 = vadd.f32 %v137, %v469
    %v474 = vadd.f32 %v140, %v470
    %v475 = vxor.u32 %v473, 2147483648
    %v476 = vxor.u32 %v474, 2147483648
    %v477 = vmul.f32 %v475, 1.442695
    %v478 = vpow.pop %v477
    %v479 = vmul.f32 %v476, 1.442695
    %v480 = vpow.pop %v479
    %v481 = vadd.f32 %v478, 1.0
    %v482 = vadd.f32 %v480, 1.0
    %v483 = vrcp.pop %v481
    %v484 = vmul.f32 %v481, %v483
    %v485 = vsub.f32 1.0, %v484
    %v486 = vmul.f32 %v483, %v485
    %v487 = vadd.f32 %v483, %v486
    %vm488 = vweird.f32 %v481
    %vm489 = vweird.f32 %v483
    %vm490 = vmor %vm488, %vm489
    %v491 = vsel %vm490, %v483, %v487
    %v492 = vand.u32 2147483647, %v481
    %vm493 = vcmp.eq.f32.partialorder %v492, 8.507059e+37
    %v494 = vand.u32 %v481, 2147483648
    %v495 = vor.u32 1.1754944e-38, %v494
    %v496 = vsel %vm493, %v495, %v491
    %v497 = vmul.f32 1.0, %v496
    %v498 = vrcp.pop %v482
    %v499 = vmul.f32 %v482, %v498
    %v500 = vsub.f32 1.0, %v499
    %v501 = vmul.f32 %v498, %v500
    %v502 = vadd.f32 %v498, %v501
    %vm503 = vweird.f32 %v482
    %vm504 = vweird.f32 %v498
    %vm505 = vmor %vm503, %vm504
    %v506 = vsel %vm505, %v498, %v502
    %v507 = vand.u32 2147483647, %v482
    %vm508 = vcmp.eq.f32.partialorder %v507, 8.507059e+37
    %v509 = vand.u32 %v482, 2147483648
    %v510 = vor.u32 1.1754944e-38, %v509
    %v511 = vsel %vm508, %v510, %v506
    %v512 = vmul.f32 1.0, %v511
    %v513 = vtanh.pop %v473
    %v514 = vtanh.pop %v474
    %v517 = vrot.slane %v425, 7
    %v518 = vrot.slane %v426, 7
    %v521 = vmul.f32 %v497, %v517
    %v522 = vmul.f32 %v512, %v518
    %525 = vrot.lane.b32.xlu0 %v513, 64
    %v526 = vpop.permute.xlu0 %525
    %527 = vrot.lane.b32.xlu0 %v514, 64
    %v528 = vpop.permute.xlu0 %527
    %v531 = vmul.f32 %v497, %v526
    %v532 = vmul.f32 %v512, %v528
    %535 = vrot.lane.b32.xlu0 %v531, 32
    %v536 = vpop.permute.xlu0 %535
    %537 = vrot.lane.b32.xlu0 %v532, 32
    %v538 = vpop.permute.xlu0 %537
    %v541 = vadd.f32 %v521, %v536
    %v542 = vadd.f32 %v522, %v538
    %v543 = vtanh.pop %v541
    %v544 = vtanh.pop %v542
    %547 = vrot.lane.b32.xlu0 %v543, 64
    %v548 = vpop.permute.xlu0 %547
    %549 = vrot.lane.b32.xlu0 %v544, 64
    %v550 = vpop.permute.xlu0 %549
    %v553 = vmul.f32 %v497, %v548
    %v554 = vmul.f32 %v512, %v550
    %v557 = vrot.slane %v553, 3
    %v558 = vrot.slane %v554, 2
    %v559 = vsel %vm207, %v558, %v557
    %560 = vrot.lane.b32.xlu0 %v559, 32
    %v561 = vpop.permute.xlu0 %560
    %v562 = vsel %vm211, %v561, 0
    %564 = vmatpush.msra.mxu0 0.0
    %565 = vmatpush.msra.mxu0 0.0
    %566 = vmatpush.msra.mxu0 0.0
    %567 = vmatpush.msra.mxu0 0.0
    %568 = vmatpush.msra.mxu0 0.0
    %569 = vmatpush.msra.mxu0 0.0
    %570 = vmatpush.msra.mxu0 0.0
    %571 = vmatpush.msra.mxu0 0.0
    %572 = vmatpush.msra.mxu0 0.0
    %573 = vmatpush.msra.mxu0 0.0
    %574 = vmatpush.msra.mxu0 0.0
    %575 = vmatpush.msra.mxu0 0.0
    %576 = vmatpush.msra.mxu0 %v105
    %577 = vmatpush.msra.mxu0 %v104
    %578 = vmatpush.msra.mxu0 %v103
    %579 = vmatpush.msra.mxu0 %v102
    %580 = vmatmul.f32.gmra.mxu0 %v562
    %v581 = vpop.f32.mrf.mxu0
    %v582 = vadd.f32 0.0, %v581
    %583 = vdwg.mxu0
    %v585 = vrot.slane %v582, 4
    %v586 = vrot.slane %v582, 5
    %v589 = vadd.f32 %v137, %v585
    %v590 = vadd.f32 %v140, %v586
    %v591 = vxor.u32 %v589, 2147483648
    %v592 = vxor.u32 %v590, 2147483648
    %v593 = vmul.f32 %v591, 1.442695
    %v594 = vpow.pop %v593
    %v595 = vmul.f32 %v592, 1.442695
    %v596 = vpow.pop %v595
    %v597 = vadd.f32 %v594, 1.0
    %v598 = vadd.f32 %v596, 1.0
    %v599 = vrcp.pop %v597
    %v600 = vmul.f32 %v597, %v599
    %v601 = vsub.f32 1.0, %v600
    %v602 = vmul.f32 %v599, %v601
    %v603 = vadd.f32 %v599, %v602
    %vm604 = vweird.f32 %v597
    %vm605 = vweird.f32 %v599
    %vm606 = vmor %vm604, %vm605
    %v607 = vsel %vm606, %v599, %v603
    %v608 = vand.u32 2147483647, %v597
    %vm609 = vcmp.eq.f32.partialorder %v608, 8.507059e+37
    %v610 = vand.u32 %v597, 2147483648
    %v611 = vor.u32 1.1754944e-38, %v610
    %v612 = vsel %vm609, %v611, %v607
    %v613 = vmul.f32 1.0, %v612
    %v614 = vrcp.pop %v598
    %v615 = vmul.f32 %v598, %v614
    %v616 = vsub.f32 1.0, %v615
    %v617 = vmul.f32 %v614, %v616
    %v618 = vadd.f32 %v614, %v617
    %vm619 = vweird.f32 %v598
    %vm620 = vweird.f32 %v614
    %vm621 = vmor %vm619, %vm620
    %v622 = vsel %vm621, %v614, %v618
    %v623 = vand.u32 2147483647, %v598
    %vm624 = vcmp.eq.f32.partialorder %v623, 8.507059e+37
    %v625 = vand.u32 %v598, 2147483648
    %v626 = vor.u32 1.1754944e-38, %v625
    %v627 = vsel %vm624, %v626, %v622
    %v628 = vmul.f32 1.0, %v627
    %v629 = vtanh.pop %v589
    %v630 = vtanh.pop %v590
    %v633 = vrot.slane %v541, 7
    %v634 = vrot.slane %v542, 7
    %v637 = vmul.f32 %v613, %v633
    %v638 = vmul.f32 %v628, %v634
    %641 = vrot.lane.b32.xlu0 %v629, 64
    %v642 = vpop.permute.xlu0 %641
    %643 = vrot.lane.b32.xlu0 %v630, 64
    %v644 = vpop.permute.xlu0 %643
    %v647 = vmul.f32 %v613, %v642
    %v648 = vmul.f32 %v628, %v644
    %651 = vrot.lane.b32.xlu0 %v647, 32
    %v652 = vpop.permute.xlu0 %651
    %653 = vrot.lane.b32.xlu0 %v648, 32
    %v654 = vpop.permute.xlu0 %653
    %v657 = vadd.f32 %v637, %v652
    %v658 = vadd.f32 %v638, %v654
    %v659 = vtanh.pop %v657
    %v660 = vtanh.pop %v658
    %663 = vrot.lane.b32.xlu0 %v659, 64
    %v664 = vpop.permute.xlu0 %663
    %665 = vrot.lane.b32.xlu0 %v660, 64
    %v666 = vpop.permute.xlu0 %665
    %v669 = vmul.f32 %v613, %v664
    %v670 = vmul.f32 %v628, %v666
    %v673 = vrot.slane %v669, 4
    %v674 = vrot.slane %v670, 3
    %v675 = vsel %vm207, %v674, %v673
    %676 = vrot.lane.b32.xlu0 %v675, 32
    %v677 = vpop.permute.xlu0 %676
    %v678 = vsel %vm211, %v677, 0
    %680 = vmatpush.msra.mxu0 0.0
    %681 = vmatpush.msra.mxu0 0.0
    %682 = vmatpush.msra.mxu0 0.0
    %683 = vmatpush.msra.mxu0 0.0
    %684 = vmatpush.msra.mxu0 0.0
    %685 = vmatpush.msra.mxu0 0.0
    %686 = vmatpush.msra.mxu0 0.0
    %687 = vmatpush.msra.mxu0 0.0
    %688 = vmatpush.msra.mxu0 0.0
    %689 = vmatpush.msra.mxu0 0.0
    %690 = vmatpush.msra.mxu0 0.0
    %691 = vmatpush.msra.mxu0 0.0
    %692 = vmatpush.msra.mxu0 %v105
    %693 = vmatpush.msra.mxu0 %v104
    %694 = vmatpush.msra.mxu0 %v103
    %695 = vmatpush.msra.mxu0 %v102
    %696 = vmatmul.f32.gmra.mxu0 %v678
    %v697 = vpop.f32.mrf.mxu0
    %v698 = vadd.f32 0.0, %v697
    %699 = vdwg.mxu0
    %v701 = vrot.slane %v698, 3
    %v702 = vrot.slane %v698, 4
    %v705 = vadd.f32 %v137, %v701
    %v706 = vadd.f32 %v140, %v702
    %v707 = vxor.u32 %v705, 2147483648
    %v708 = vxor.u32 %v706, 2147483648
    %v709 = vmul.f32 %v707, 1.442695
    %v710 = vpow.pop %v709
    %v711 = vmul.f32 %v708, 1.442695
    %v712 = vpow.pop %v711
    %v713 = vadd.f32 %v710, 1.0
    %v714 = vadd.f32 %v712, 1.0
    %v715 = vrcp.pop %v713
    %v716 = vmul.f32 %v713, %v715
    %v717 = vsub.f32 1.0, %v716
    %v718 = vmul.f32 %v715, %v717
    %v719 = vadd.f32 %v715, %v718
    %vm720 = vweird.f32 %v713
    %vm721 = vweird.f32 %v715
    %vm722 = vmor %vm720, %vm721
    %v723 = vsel %vm722, %v715, %v719
    %v724 = vand.u32 2147483647, %v713
    %vm725 = vcmp.eq.f32.partialorder %v724, 8.507059e+37
    %v726 = vand.u32 %v713, 2147483648
    %v727 = vor.u32 1.1754944e-38, %v726
    %v728 = vsel %vm725, %v727, %v723
    %v729 = vmul.f32 1.0, %v728
    %v730 = vrcp.pop %v714
    %v731 = vmul.f32 %v714, %v730
    %v732 = vsub.f32 1.0, %v731
    %v733 = vmul.f32 %v730, %v732
    %v734 = vadd.f32 %v730, %v733
    %vm735 = vweird.f32 %v714
    %vm736 = vweird.f32 %v730
    %vm737 = vmor %vm735, %vm736
    %v738 = vsel %vm737, %v730, %v734
    %v739 = vand.u32 2147483647, %v714
    %vm740 = vcmp.eq.f32.partialorder %v739, 8.507059e+37
    %v741 = vand.u32 %v714, 2147483648
    %v742 = vor.u32 1.1754944e-38, %v741
    %v743 = vsel %vm740, %v742, %v738
    %v744 = vmul.f32 1.0, %v743
    %v745 = vtanh.pop %v705
    %v746 = vtanh.pop %v706
    %v749 = vrot.slane %v657, 7
    %v750 = vrot.slane %v658, 7
    %v753 = vmul.f32 %v729, %v749
    %v754 = vmul.f32 %v744, %v750
    %757 = vrot.lane.b32.xlu0 %v745, 64
    %v758 = vpop.permute.xlu0 %757
    %759 = vrot.lane.b32.xlu0 %v746, 64
    %v760 = vpop.permute.xlu0 %759
    %v763 = vmul.f32 %v729, %v758
    %v764 = vmul.f32 %v744, %v760
    %767 = vrot.lane.b32.xlu0 %v763, 32
    %v768 = vpop.permute.xlu0 %767
    %769 = vrot.lane.b32.xlu0 %v764, 32
    %v770 = vpop.permute.xlu0 %769
    %v773 = vadd.f32 %v753, %v768
    %v774 = vadd.f32 %v754, %v770
    %v775 = vtanh.pop %v773
    %v776 = vtanh.pop %v774
    %779 = vrot.lane.b32.xlu0 %v775, 64
    %v780 = vpop.permute.xlu0 %779
    %781 = vrot.lane.b32.xlu0 %v776, 64
    %v782 = vpop.permute.xlu0 %781
    %v785 = vmul.f32 %v729, %v780
    %v786 = vmul.f32 %v744, %v782
    %v789 = vrot.slane %v785, 5
    %v790 = vrot.slane %v786, 4
    %v791 = vsel %vm207, %v790, %v789
    %792 = vrot.lane.b32.xlu0 %v791, 32
    %v793 = vpop.permute.xlu0 %792
    %v794 = vsel %vm211, %v793, 0
    %796 = vmatpush.msra.mxu0 0.0
    %797 = vmatpush.msra.mxu0 0.0
    %798 = vmatpush.msra.mxu0 0.0
    %799 = vmatpush.msra.mxu0 0.0
    %800 = vmatpush.msra.mxu0 0.0
    %801 = vmatpush.msra.mxu0 0.0
    %802 = vmatpush.msra.mxu0 0.0
    %803 = vmatpush.msra.mxu0 0.0
    %804 = vmatpush.msra.mxu0 0.0
    %805 = vmatpush.msra.mxu0 0.0
    %806 = vmatpush.msra.mxu0 0.0
    %807 = vmatpush.msra.mxu0 0.0
    %808 = vmatpush.msra.mxu0 %v105
    %809 = vmatpush.msra.mxu0 %v104
    %810 = vmatpush.msra.mxu0 %v103
    %811 = vmatpush.msra.mxu0 %v102
    %812 = vmatmul.f32.gmra.mxu0 %v794
    %v813 = vpop.f32.mrf.mxu0
    %v814 = vadd.f32 0.0, %v813
    %815 = vdwg.mxu0
    %v817 = vrot.slane %v814, 2
    %v818 = vrot.slane %v814, 3
    %v821 = vadd.f32 %v137, %v817
    %v822 = vadd.f32 %v140, %v818
    %v823 = vxor.u32 %v821, 2147483648
    %v824 = vxor.u32 %v822, 2147483648
    %v825 = vmul.f32 %v823, 1.442695
    %v826 = vpow.pop %v825
    %v827 = vmul.f32 %v824, 1.442695
    %v828 = vpow.pop %v827
    %v829 = vadd.f32 %v826, 1.0
    %v830 = vadd.f32 %v828, 1.0
    %v831 = vrcp.pop %v829
    %v832 = vmul.f32 %v829, %v831
    %v833 = vsub.f32 1.0, %v832
    %v834 = vmul.f32 %v831, %v833
    %v835 = vadd.f32 %v831, %v834
    %vm836 = vweird.f32 %v829
    %vm837 = vweird.f32 %v831
    %vm838 = vmor %vm836, %vm837
    %v839 = vsel %vm838, %v831, %v835
    %v840 = vand.u32 2147483647, %v829
    %vm841 = vcmp.eq.f32.partialorder %v840, 8.507059e+37
    %v842 = vand.u32 %v829, 2147483648
    %v843 = vor.u32 1.1754944e-38, %v842
    %v844 = vsel %vm841, %v843, %v839
    %v845 = vmul.f32 1.0, %v844
    %v846 = vrcp.pop %v830
    %v847 = vmul.f32 %v830, %v846
    %v848 = vsub.f32 1.0, %v847
    %v849 = vmul.f32 %v846, %v848
    %v850 = vadd.f32 %v846, %v849
    %vm851 = vweird.f32 %v830
    %vm852 = vweird.f32 %v846
    %vm853 = vmor %vm851, %vm852
    %v854 = vsel %vm853, %v846, %v850
    %v855 = vand.u32 2147483647, %v830
    %vm856 = vcmp.eq.f32.partialorder %v855, 8.507059e+37
    %v857 = vand.u32 %v830, 2147483648
    %v858 = vor.u32 1.1754944e-38, %v857
    %v859 = vsel %vm856, %v858, %v854
    %v860 = vmul.f32 1.0, %v859
    %v861 = vtanh.pop %v821
    %v862 = vtanh.pop %v822
    %v865 = vrot.slane %v773, 7
    %v866 = vrot.slane %v774, 7
    %v869 = vmul.f32 %v845, %v865
    %v870 = vmul.f32 %v860, %v866
    %873 = vrot.lane.b32.xlu0 %v861, 64
    %v874 = vpop.permute.xlu0 %873
    %875 = vrot.lane.b32.xlu0 %v862, 64
    %v876 = vpop.permute.xlu0 %875
    %v879 = vmul.f32 %v845, %v874
    %v880 = vmul.f32 %v860, %v876
    %883 = vrot.lane.b32.xlu0 %v879, 32
    %v884 = vpop.permute.xlu0 %883
    %885 = vrot.lane.b32.xlu0 %v880, 32
    %v886 = vpop.permute.xlu0 %885
    %v889 = vadd.f32 %v869, %v884
    %v890 = vadd.f32 %v870, %v886
    %v891 = vtanh.pop %v889
    %v892 = vtanh.pop %v890
    %895 = vrot.lane.b32.xlu0 %v891, 64
    %v896 = vpop.permute.xlu0 %895
    %897 = vrot.lane.b32.xlu0 %v892, 64
    %v898 = vpop.permute.xlu0 %897
    %v901 = vmul.f32 %v845, %v896
    %v902 = vmul.f32 %v860, %v898
    %v905 = vrot.slane %v901, 6
    %v906 = vrot.slane %v902, 5
    %v907 = vsel %vm207, %v906, %v905
    %908 = vrot.lane.b32.xlu0 %v907, 32
    %v909 = vpop.permute.xlu0 %908
    %v910 = vsel %vm211, %v909, 0
    %912 = vmatpush.msra.mxu0 0.0
    %913 = vmatpush.msra.mxu0 0.0
    %914 = vmatpush.msra.mxu0 0.0
    %915 = vmatpush.msra.mxu0 0.0
    %916 = vmatpush.msra.mxu0 0.0
    %917 = vmatpush.msra.mxu0 0.0
    %918 = vmatpush.msra.mxu0 0.0
    %919 = vmatpush.msra.mxu0 0.0
    %920 = vmatpush.msra.mxu0 0.0
    %921 = vmatpush.msra.mxu0 0.0
    %922 = vmatpush.msra.mxu0 0.0
    %923 = vmatpush.msra.mxu0 0.0
    %924 = vmatpush.msra.mxu0 %v105
    %925 = vmatpush.msra.mxu0 %v104
    %926 = vmatpush.msra.mxu0 %v103
    %927 = vmatpush.msra.mxu0 %v102
    %928 = vmatmul.f32.gmra.mxu0 %v910
    %v929 = vpop.f32.mrf.mxu0
    %v930 = vadd.f32 0.0, %v929
    %931 = vdwg.mxu0
    %v933 = vrot.slane %v930, 1
    %v934 = vrot.slane %v930, 2
    %v937 = vadd.f32 %v137, %v933
    %v938 = vadd.f32 %v140, %v934
    %v939 = vxor.u32 %v937, 2147483648
    %v940 = vxor.u32 %v938, 2147483648
    %v941 = vmul.f32 %v939, 1.442695
    %v942 = vpow.pop %v941
    %v943 = vmul.f32 %v940, 1.442695
    %v944 = vpow.pop %v943
    %v945 = vadd.f32 %v942, 1.0
    %v946 = vadd.f32 %v944, 1.0
    %v947 = vrcp.pop %v945
    %v948 = vmul.f32 %v945, %v947
    %v949 = vsub.f32 1.0, %v948
    %v950 = vmul.f32 %v947, %v949
    %v951 = vadd.f32 %v947, %v950
    %vm952 = vweird.f32 %v945
    %vm953 = vweird.f32 %v947
    %vm954 = vmor %vm952, %vm953
    %v955 = vsel %vm954, %v947, %v951
    %v956 = vand.u32 2147483647, %v945
    %vm957 = vcmp.eq.f32.partialorder %v956, 8.507059e+37
    %v958 = vand.u32 %v945, 2147483648
    %v959 = vor.u32 1.1754944e-38, %v958
    %v960 = vsel %vm957, %v959, %v955
    %v961 = vmul.f32 1.0, %v960
    %v962 = vrcp.pop %v946
    %v963 = vmul.f32 %v946, %v962
    %v964 = vsub.f32 1.0, %v963
    %v965 = vmul.f32 %v962, %v964
    %v966 = vadd.f32 %v962, %v965
    %vm967 = vweird.f32 %v946
    %vm968 = vweird.f32 %v962
    %vm969 = vmor %vm967, %vm968
    %v970 = vsel %vm969, %v962, %v966
    %v971 = vand.u32 2147483647, %v946
    %vm972 = vcmp.eq.f32.partialorder %v971, 8.507059e+37
    %v973 = vand.u32 %v946, 2147483648
    %v974 = vor.u32 1.1754944e-38, %v973
    %v975 = vsel %vm972, %v974, %v970
    %v976 = vmul.f32 1.0, %v975
    %v977 = vtanh.pop %v937
    %v978 = vtanh.pop %v938
    %v981 = vrot.slane %v889, 7
    %v982 = vrot.slane %v890, 7
    %v985 = vmul.f32 %v961, %v981
    %v986 = vmul.f32 %v976, %v982
    %989 = vrot.lane.b32.xlu0 %v977, 64
    %v990 = vpop.permute.xlu0 %989
    %991 = vrot.lane.b32.xlu0 %v978, 64
    %v992 = vpop.permute.xlu0 %991
    %v995 = vmul.f32 %v961, %v990
    %v996 = vmul.f32 %v976, %v992
    %999 = vrot.lane.b32.xlu0 %v995, 32
    %v1000 = vpop.permute.xlu0 %999
    %1001 = vrot.lane.b32.xlu0 %v996, 32
    %v1002 = vpop.permute.xlu0 %1001
    %v1005 = vadd.f32 %v985, %v1000
    %v1006 = vadd.f32 %v986, %v1002
    %v1007 = vtanh.pop %v1005
    %v1008 = vtanh.pop %v1006
    %1011 = vrot.lane.b32.xlu0 %v1007, 64
    %v1012 = vpop.permute.xlu0 %1011
    %1013 = vrot.lane.b32.xlu0 %v1008, 64
    %v1014 = vpop.permute.xlu0 %1013
    %v1017 = vmul.f32 %v961, %v1012
    %v1018 = vmul.f32 %v976, %v1014
    %v1019 = vld [vmem:[#allocation8] sm:$0xff]
    %v1020 = vld [vmem:[#allocation8 + $0x8] sm:$0xff]
    %v1021 = vld [vmem:[%s5] sm:$0x1]
    %v1023 = vperm.slane %v1021, 0
    %v1025 = vrot.slane %v100, 7
    %v1026 = vrot.slane %v101, 6
    %v1027 = vsel %vm207, %v1026, %v1025
    %v1028 = vsel %vm112, %v1027, 0
    %1030 = vmatpush.msra.mxu0 0.0
    %1031 = vmatpush.msra.mxu0 0.0
    %1032 = vmatpush.msra.mxu0 0.0
    %1033 = vmatpush.msra.mxu0 0.0
    %1034 = vmatpush.msra.mxu0 0.0
    %1035 = vmatpush.msra.mxu0 0.0
    %1036 = vmatpush.msra.mxu0 0.0
    %1037 = vmatpush.msra.mxu0 0.0
    %1038 = vmatpush.msra.mxu0 0.0
    %1039 = vmatpush.msra.mxu0 0.0
    %1040 = vmatpush.msra.mxu0 0.0
    %1041 = vmatpush.msra.mxu0 0.0
    %1042 = vmatpush.msra.mxu0 0.0
    %1043 = vmatpush.msra.mxu0 0.0
    %1044 = vmatpush.msra.mxu0 %v1020
    %1045 = vmatpush.msra.mxu0 %v1019
    %1046 = vmatmul.f32.gmra.mxu0 %v1028
    %v1047 = vpop.f32.mrf.mxu0
    %v1048 = vadd.f32 %v1023, %v1047
    %1049 = vdwg.mxu0
    %v1050 = vxor.u32 %v1048, 2147483648
    %v1051 = vmul.f32 %v1050, 1.442695
    %v1052 = vpow.pop %v1051
    %v1053 = vadd.f32 %v1052, 1.0
    %v1054 = vrcp.pop %v1053
    %v1055 = vmul.f32 %v1053, %v1054
    %v1056 = vsub.f32 1.0, %v1055
    %v1057 = vmul.f32 %v1054, %v1056
    %v1058 = vadd.f32 %v1054, %v1057
    %vm1059 = vweird.f32 %v1053
    %vm1060 = vweird.f32 %v1054
    %vm1061 = vmor %vm1059, %vm1060
    %v1062 = vsel %vm1061, %v1054, %v1058
    %v1063 = vand.u32 2147483647, %v1053
    %vm1064 = vcmp.eq.f32.partialorder %v1063, 8.507059e+37
    %v1065 = vand.u32 %v1053, 2147483648
    %v1066 = vor.u32 1.1754944e-38, %v1065
    %v1067 = vsel %vm1064, %v1066, %v1062
    %v1068 = vmul.f32 1.0, %v1067
    %v1069 = vtanh.pop %v1048
    %1071 = vrot.lane.b32.xlu0 %v1069, 64
    %v1072 = vpop.permute.xlu0 %1071
    %v1074 = vmul.f32 %v1068, %v1072
    %v1075 = vtanh.pop %v1074
    %1077 = vrot.lane.b32.xlu0 %v1075, 96
    %v1078 = vpop.permute.xlu0 %1077
    %v1080 = vmul.f32 %v1068, %v1078
    %v1083 = vrot.slane %v1018, 7
    %1084 = vrot.lane.b32.xlu0 %v1017, 32
    %v1085 = vpop.permute.xlu0 %1084
    %1086 = vrot.lane.b32.xlu0 %v1083, 32
    %v1087 = vpop.permute.xlu0 %1086
    %v1091 = vrot.slane %v1080, 1
    %1092 = vrot.lane.b32.xlu0 %v1091, 64
    %v1093 = vpop.permute.xlu0 %1092
    %v1095 = vsel %vm211, %v1085, %v1093
    %v1096 = vsel %vm211, %v1087, %v1093
    %vm1097 = vcmask 523271
    %v1098 = vsel %vm1097, %v1095, 0.0
    %1099 = vadd.xlane.f32.xlu0 %v1098
    %v1100 = vpop.xlane.xlu0 %1099
    %vm1101 = vcmask 516096
    %v1102 = vsel %vm1101, %v1096, 0.0
    %1103 = vadd.xlane.f32.xlu0 %v1102
    %v1104 = vpop.xlane.xlu0 %1103
    %v1105 = vrcp.pop 64.0
    %v1106 = vmul.f32 64.0, %v1105
    %v1107 = vsub.f32 1.0, %v1106
    %v1108 = vmul.f32 %v1105, %v1107
    %v1109 = vadd.f32 %v1105, %v1108
    %vm1110 = vweird.f32 %v1105
    %v1111 = vsel %vm1110, %v1105, %v1109
    %v1112 = vmul.f32 %v1100, %v1111
    %v1113 = vmul.f32 %v1104, %v1111
    %v1114 = vsub.f32 %v1095, %v1112
    %v1115 = vsub.f32 %v1096, %v1113
    %v1116 = vmul.f32 %v1114, %v1114
    %v1117 = vmul.f32 %v1115, %v1115
    %v1118 = vsel %vm1097, %v1116, 0.0
    %1119 = vadd.xlane.f32.xlu0 %v1118
    %v1120 = vpop.xlane.xlu0 %1119
    %v1121 = vsel %vm1101, %v1117, 0.0
    %1122 = vadd.xlane.f32.xlu0 %v1121
    %v1123 = vpop.xlane.xlu0 %1122
    %v1124 = vmul.f32 %v1120, %v1111
    %v1125 = vmul.f32 %v1123, %v1111
    %v1126 = vadd.f32 %v1124, 1e-05
    %v1127 = vadd.f32 %v1125, 1e-05
    %v1128 = vrsqrt.pop %v1126
    %v1129 = vmul.f32 %v1128, %v1126
    %v1130 = vmul.f32 %v1129, %v1128
    %v1131 = vmul.f32 0.5, %v1130
    %v1132 = vsub.f32 1.5, %v1131
    %v1133 = vmul.f32 %v1128, %v1132
    %vm1134 = vweird.f32 %v1126
    %vm1135 = vweird.f32 %v1128
    %vm1136 = vmor %vm1134, %vm1135
    %v1137 = vsel %vm1136, %v1128, %v1133
    %v1138 = vrsqrt.pop %v1127
    %v1139 = vmul.f32 %v1138, %v1127
    %v1140 = vmul.f32 %v1139, %v1138
    %v1141 = vmul.f32 0.5, %v1140
    %v1142 = vsub.f32 1.5, %v1141
    %v1143 = vmul.f32 %v1138, %v1142
    %vm1144 = vweird.f32 %v1127
    %vm1145 = vweird.f32 %v1138
    %vm1146 = vmor %vm1144, %vm1145
    %v1147 = vsel %vm1146, %v1138, %v1143
    %v1148 = vmul.f32 %v1114, %v1137
    %v1149 = vmul.f32 %v1115, %v1147
    %v1150 = vld [vmem:[%s6] sm:$0x1]
    %v1152 = vperm.slane %v1150, 0
    %v1154 = vmul.f32 %v1148, %v1152
    %v1155 = vmul.f32 %v1149, %v1152
    %v1156 = vld [vmem:[%s7] sm:$0x1]
    %v1158 = vperm.slane %v1156, 0
    %v1160 = vadd.f32 %v1154, %v1158
    %v1161 = vadd.f32 %v1155, %v1158
    %v1162 = vld [vmem:[%s8] sm:$0x1]
    %v1164 = vperm.slane %v1162, 0
    %v1166 = vmul.f32 %v1160, %v1164
    %v1167 = vmul.f32 %v1161, %v1164
    %v1168 = vsel %vm1097, %v1166, 0.0
    %1169 = vadd.xlane.f32.xlu0 %v1168
    %v1170 = vpop.xlane.xlu0 %1169
    %v1171 = vsel %vm1101, %v1167, 0.0
    %1172 = vadd.xlane.f32.xlu0 %v1171
    %v1173 = vpop.xlane.xlu0 %1172
    %v1174 = vld [vmem:[#allocation2] sm:$0x1]
    %v1176 = vperm.slane %v1174, 0
    %v1178 = vadd.f32 %v1170, %v1176
    %v1179 = vadd.f32 %v1173, %v1176
    %v1180 = vxor.u32 %v1178, 2147483648
    %v1181 = vxor.u32 %v1179, 2147483648
    %v1182 = vmul.f32 %v1180, 1.442695
    %v1183 = vpow.pop %v1182
    %v1184 = vmul.f32 %v1181, 1.442695
    %v1185 = vpow.pop %v1184
    %v1186 = vadd.f32 %v1183, 1.0
    %v1187 = vadd.f32 %v1185, 1.0
    %v1188 = vrcp.pop %v1186
    %v1189 = vmul.f32 %v1186, %v1188
    %v1190 = vsub.f32 1.0, %v1189
    %v1191 = vmul.f32 %v1188, %v1190
    %v1192 = vadd.f32 %v1188, %v1191
    %vm1193 = vweird.f32 %v1186
    %vm1194 = vweird.f32 %v1188
    %vm1195 = vmor %vm1193, %vm1194
    %v1196 = vsel %vm1195, %v1188, %v1192
    %v1197 = vand.u32 2147483647, %v1186
    %vm1198 = vcmp.eq.f32.partialorder %v1197, 8.507059e+37
    %v1199 = vand.u32 %v1186, 2147483648
    %v1200 = vor.u32 1.1754944e-38, %v1199
    %v1201 = vsel %vm1198, %v1200, %v1196
    %v1202 = vmul.f32 1.0, %v1201
    %v1203 = vrcp.pop %v1187
    %v1204 = vmul.f32 %v1187, %v1203
    %v1205 = vsub.f32 1.0, %v1204
    %v1206 = vmul.f32 %v1203, %v1205
    %v1207 = vadd.f32 %v1203, %v1206
    %vm1208 = vweird.f32 %v1187
    %vm1209 = vweird.f32 %v1203
    %vm1210 = vmor %vm1208, %vm1209
    %v1211 = vsel %vm1210, %v1203, %v1207
    %v1212 = vand.u32 2147483647, %v1187
    %vm1213 = vcmp.eq.f32.partialorder %v1212, 8.507059e+37
    %v1214 = vand.u32 %v1187, 2147483648
    %v1215 = vor.u32 1.1754944e-38, %v1214
    %v1216 = vsel %vm1213, %v1215, %v1211
    %v1217 = vmul.f32 1.0, %v1216
    %vm1218 = vcmask 7175
    %1219 = vst.msk [vmem:[%s10 - $0x7] sm:$0x80] %vm1218, %v1202
    %vm1220 = vcmask 0
    %1221 = vst.msk [vmem:[%s10 + $0x1] sm:$0x1] %vm1220, %v1217
    // Predicated region
    $region58: #{tpu_custom_call.1} parent=1 // pred_check
      _
    $region59: #{tpu_custom_call.1} parent=1 // pred_check_branch
      %1223 = sbr.rel (0) target = $region61
    $region60: #{tpu_custom_call.1} parent=1 // pred_region
      _
    $region61: #{tpu_custom_call.1} parent=1 // pred_fallthru
      _
    // Predicated region
    $region62: #{tpu_custom_call.1} parent=1 // pred_check
      _
    $region63: #{tpu_custom_call.1} parent=1 // pred_check_branch
      %1225 = sbr.rel (0) target = $region65
    $region64: #{tpu_custom_call.1} parent=1 // pred_region
      _
    $region65: #{tpu_custom_call.1} parent=1 // pred_fallthru
      _
    %1226 = vsyncpa [#allocation4], 1
    %1227 = vsyncpa [#allocation6], 1
    %1228 = vsyncpa [#allocation9], 1

</llo_original>
